<compile_context>
chip_gen: v6e
topology: v6e:2x2x1
jax: 0.10.0
libtpu: 0.0.40
codegen_flags: <defaults>
</compile_context>

<pallas_src>
import jax
import jax.numpy as jnp
from jax.experimental import pallas as pl
from jax.experimental.pallas import tpu as pltpu


def _round_up(x, m):
    return (x + m - 1) // m * m


def _mlp_kernel(sza_ref, saa_ref, w1_ref, b1_ref, w2_ref, b2_ref,
                w3_ref, b3_ref, o_ref):
    # Per grid step:
    #   sza_ref, saa_ref : (TB, 1)  f32 (VMEM)
    #   w1 (2,4), b1 (1,4)          f32 (SMEM scalars)
    #   w2 (4,8), b2 (1,8)          f32 (VMEM, resident)
    #   w3 (8,OUT_PAD), b3 (1,OUT_PAD)  f32 (VMEM, resident)
    #   o_ref : (TB, OUT_PAD)       f32 (OUT_PAD % 128 == 0 -> unmasked stores)
    s = sza_ref[...]                      # (TB, 1)
    a = saa_ref[...]                      # (TB, 1)

    # ---- layer 1 (2 -> 4): scalar-weight FMAs on the VPU ----
    h1 = [jax.nn.sigmoid(s * w1_ref[0, j] + a * w1_ref[1, j] + b1_ref[0, j])
          for j in range(4)]              # 4 x (TB, 1)

    # ---- layer 2 (4 -> 8): broadcast FMAs on the VPU ----
    h2 = b2_ref[...]                      # (1, 8), broadcasts up
    for j in range(4):                    # static unroll
        h2 = h2 + h1[j] * w2_ref[j:j + 1, :]      # (TB,1)*(1,8) -> (TB,8)
    h2 = jax.nn.sigmoid(h2)               # (TB, 8)

    # ---- layer 3 (8 -> OUT_PAD): the only matmul worth the MXU ----
    out = jnp.dot(h2, w3_ref[...], preferred_element_type=jnp.float32) + b3_ref[...]
    o_ref[...] = jax.nn.sigmoid(out).astype(o_ref.dtype)


def sza_saa_to_grid_pos(sza, saa, params, grid_size, *, tb=256):
    """sza, saa: (B, 1) float32.  Returns (B, grid_size*grid_size) float32."""
    w1, b1, w2, b2, w3, b3 = params
    B = sza.shape[0]
    out_dim = grid_size * grid_size

    # Lane-dense output: pad the feature dim to a multiple of 128.
    out_pad = _round_up(out_dim, 128)
    if out_pad != out_dim:
        w3 = jnp.pad(w3, ((0, 0), (0, out_pad - out_dim)))
        b3 = jnp.pad(b3, ((0, 0), (0, out_pad - out_dim)))

    # Batch tile: cap the per-step output tile at ~4 MiB so it double-buffers
    # comfortably inside every generation's scoped VMEM (incl. v7x 64 MiB),
    # while still giving many grid steps for pipelining / megacore sharding.
    max_out_tile_bytes = 4 * 1024 * 1024
    tb_cap = max(8, (max_out_tile_bytes // (out_pad * 4)) // 8 * 8)
    tb_eff = min(tb, tb_cap, _round_up(B, 8))
    B_pad = _round_up(B, tb_eff)
    if B_pad != B:
        sza = jnp.pad(sza, ((0, B_pad - B), (0, 0)))
        saa = jnp.pad(saa, ((0, B_pad - B), (0, 0)))
    sza = sza.astype(jnp.float32)
    saa = saa.astype(jnp.float32)

    grid = (B_pad // tb_eff,)
    out = pl.pallas_call(
        _mlp_kernel,
        out_shape=jax.ShapeDtypeStruct((B_pad, out_pad), jnp.float32),
        grid_spec=pl.GridSpec(
            grid=grid,
            in_specs=[
                pl.BlockSpec((tb_eff, 1), lambda i: (i, 0)),          # sza tile
                pl.BlockSpec((tb_eff, 1), lambda i: (i, 0)),          # saa tile
                pl.BlockSpec(memory_space=pltpu.MemorySpace.SMEM),    # w1 (2,4) scalars
                pl.BlockSpec(memory_space=pltpu.MemorySpace.SMEM),    # b1 (1,4) scalars
                pl.BlockSpec((4, 8), lambda i: (0, 0)),               # w2 (resident)
                pl.BlockSpec((1, 8), lambda i: (0, 0)),               # b2
                pl.BlockSpec((8, out_pad), lambda i: (0, 0)),         # w3 (resident)
                pl.BlockSpec((1, out_pad), lambda i: (0, 0)),         # b3
            ],
            out_specs=pl.BlockSpec((tb_eff, out_pad), lambda i: (i, 0)),
        ),
        compiler_params=pltpu.CompilerParams(
            dimension_semantics=("parallel",),
            vmem_limit_bytes=32 * 1024 * 1024,
        ),
    )(sza, saa, w1, b1, w2, b2, w3, b3)

    if B_pad != B or out_pad != out_dim:
        out = out[:B, :out_dim]
    return out


def init_params(key, grid_size):
    """Deterministic synthetic init mirroring nn.Linear shapes.

    PyTorch Linear stores weight as (out, in); we store the transpose (in, out)
    so the kernel computes x @ W + b directly.
    """
    out_dim = grid_size * grid_size
    ks = jax.random.split(key, 6)

    def lin(kw, kb, fan_in, fan_out):
        bound = 1.0 / jnp.sqrt(jnp.float32(fan_in))
        w = jax.random.uniform(kw, (fan_in, fan_out), jnp.float32, -bound, bound)
        b = jax.random.uniform(kb, (1, fan_out), jnp.float32, -bound, bound)
        return w, b

    w1, b1 = lin(ks[0], ks[1], 2, 4)
    w2, b2 = lin(ks[2], ks[3], 4, 8)
    w3, b3 = lin(ks[4], ks[5], 8, out_dim)
    return (w1, b1, w2, b2, w3, b3)


def reference(sza, saa, params):
    w1, b1, w2, b2, w3, b3 = params
    x = jnp.concatenate([sza, saa], axis=1)
    h1 = jax.nn.sigmoid(x @ w1 + b1)
    h2 = jax.nn.sigmoid(h1 @ w2 + b2)
    return jax.nn.sigmoid(h2 @ w3 + b3)


if __name__ == "__main__":
    grid_size = 4          # gridSize -> output dim 16
    batch = 8

    key = jax.random.PRNGKey(0)
    k_sza, k_saa, k_params = jax.random.split(key, 3)

    sza = jax.random.uniform(k_sza, (batch, 1), jnp.float32, 0.0, 90.0)
    saa = jax.random.uniform(k_saa, (batch, 1), jnp.float32, 0.0, 360.0)
    params = init_params(k_params, grid_size)

    out = sza_saa_to_grid_pos(sza, saa, params, grid_size)
    out = jax.block_until_ready(out)
    ref = reference(sza, saa, params)
    assert out.shape == (batch, grid_size * grid_size)
    assert jnp.allclose(out, ref, atol=1e-5, rtol=1e-5), "mismatch vs reference"

    # Second check: exercises batch padding + multi-step grid (pipelined path).
    batch2 = 20
    sza2 = jax.random.uniform(jax.random.PRNGKey(1), (batch2, 1), jnp.float32, 0.0, 90.0)
    saa2 = jax.random.uniform(jax.random.PRNGKey(2), (batch2, 1), jnp.float32, 0.0, 360.0)
    out2 = jax.block_until_ready(
        sza_saa_to_grid_pos(sza2, saa2, params, grid_size, tb=8))
    ref2 = reference(sza2, saa2, params)
    assert out2.shape == (batch2, grid_size * grid_size)
    assert jnp.allclose(out2, ref2, atol=1e-5, rtol=1e-5), "mismatch vs reference (tiled)"

    print("KERNEL_OK")
</pallas_src>

<mosaic_0001>
module attributes {stable_mosaic.version = 11 : i64} {
  func.func @_mlp_kernel(%arg0: i32, %arg1: memref<8x1xf32, #tpu.memory_space<vmem>>, %arg2: memref<8x1xf32, #tpu.memory_space<vmem>>, %arg3: memref<2x4xf32, #tpu.memory_space<smem>>, %arg4: memref<1x4xf32, #tpu.memory_space<smem>>, %arg5: memref<4x8xf32, #tpu.memory_space<vmem>>, %arg6: memref<1x8xf32, #tpu.memory_space<vmem>>, %arg7: memref<8x128xf32, #tpu.memory_space<vmem>>, %arg8: memref<1x128xf32, #tpu.memory_space<vmem>>, %arg9: memref<8x128xf32, #tpu.memory_space<vmem>>) attributes {dimension_semantics = [#tpu.dimension_semantics<parallel>], iteration_bounds = array<i64: 1>, scalar_prefetch = 0 : i64, scratch_operands = 0 : i64, tpu.core_type = #tpu.core_type<tc>, window_params = [{transform_indices = @transform_0, window_bounds = array<i64: 8, 1>}, {transform_indices = @transform_1, window_bounds = array<i64: 8, 1>}, {transform_indices = @transform_2, window_bounds = array<i64: 2, 4>}, {transform_indices = @transform_3, window_bounds = array<i64: 1, 4>}, {pipeline_mode = #tpu.pipeline_mode<synchronous>, transform_indices = @transform_4, window_bounds = array<i64: 4, 8>}, {pipeline_mode = #tpu.pipeline_mode<synchronous>, transform_indices = @transform_5, window_bounds = array<i64: 1, 8>}, {pipeline_mode = #tpu.pipeline_mode<synchronous>, transform_indices = @transform_6, window_bounds = array<i64: 8, 128>}, {pipeline_mode = #tpu.pipeline_mode<synchronous>, transform_indices = @transform_7, window_bounds = array<i64: 1, 128>}, {transform_indices = @transform_8, window_bounds = array<i64: 8, 128>}]} {
    %c0 = arith.constant 0 : index
    %c0_0 = arith.constant 0 : index
    %0 = vector.load %arg1[%c0, %c0_0] : memref<8x1xf32, #tpu.memory_space<vmem>>, vector<8x1xf32>
    %c0_1 = arith.constant 0 : index
    %c0_2 = arith.constant 0 : index
    %1 = vector.load %arg2[%c0_1, %c0_2] : memref<8x1xf32, #tpu.memory_space<vmem>>, vector<8x1xf32>
    %c0_3 = arith.constant 0 : index
    %c0_4 = arith.constant 0 : index
    %2 = memref.load %arg3[%c0_3, %c0_4] : memref<2x4xf32, #tpu.memory_space<smem>>
    %3 = vector.broadcast %2 : f32 to vector<8x1xf32>
    %4 = arith.mulf %0, %3 : vector<8x1xf32>
    %c1 = arith.constant 1 : index
    %c0_5 = arith.constant 0 : index
    %5 = memref.load %arg3[%c1, %c0_5] : memref<2x4xf32, #tpu.memory_space<smem>>
    %6 = vector.broadcast %5 : f32 to vector<8x1xf32>
    %7 = arith.mulf %1, %6 : vector<8x1xf32>
    %8 = arith.addf %4, %7 : vector<8x1xf32>
    %c0_6 = arith.constant 0 : index
    %c0_7 = arith.constant 0 : index
    %9 = memref.load %arg4[%c0_6, %c0_7] : memref<1x4xf32, #tpu.memory_space<smem>>
    %10 = vector.broadcast %9 : f32 to vector<8x1xf32>
    %11 = arith.addf %8, %10 : vector<8x1xf32>
    %12 = arith.negf %11 : vector<8x1xf32>
    %13 = math.exp %12 : vector<8x1xf32>
    %cst = arith.constant 1.000000e+00 : f32
    %14 = vector.broadcast %cst : f32 to vector<8x1xf32>
    %15 = arith.addf %14, %13 : vector<8x1xf32>
    %16 = arith.divf %14, %15 : vector<8x1xf32>
    %c0_8 = arith.constant 0 : index
    %c1_9 = arith.constant 1 : index
    %17 = memref.load %arg3[%c0_8, %c1_9] : memref<2x4xf32, #tpu.memory_space<smem>>
    %18 = vector.broadcast %17 : f32 to vector<8x1xf32>
    %19 = arith.mulf %0, %18 : vector<8x1xf32>
    %c1_10 = arith.constant 1 : index
    %c1_11 = arith.constant 1 : index
    %20 = memref.load %arg3[%c1_10, %c1_11] : memref<2x4xf32, #tpu.memory_space<smem>>
    %21 = vector.broadcast %20 : f32 to vector<8x1xf32>
    %22 = arith.mulf %1, %21 : vector<8x1xf32>
    %23 = arith.addf %19, %22 : vector<8x1xf32>
    %c0_12 = arith.constant 0 : index
    %c1_13 = arith.constant 1 : index
    %24 = memref.load %arg4[%c0_12, %c1_13] : memref<1x4xf32, #tpu.memory_space<smem>>
    %25 = vector.broadcast %24 : f32 to vector<8x1xf32>
    %26 = arith.addf %23, %25 : vector<8x1xf32>
    %27 = arith.negf %26 : vector<8x1xf32>
    %28 = math.exp %27 : vector<8x1xf32>
    %cst_14 = arith.constant 1.000000e+00 : f32
    %29 = vector.broadcast %cst_14 : f32 to vector<8x1xf32>
    %30 = arith.addf %29, %28 : vector<8x1xf32>
    %31 = arith.divf %29, %30 : vector<8x1xf32>
    %c0_15 = arith.constant 0 : index
    %c2 = arith.constant 2 : index
    %32 = memref.load %arg3[%c0_15, %c2] : memref<2x4xf32, #tpu.memory_space<smem>>
    %33 = vector.broadcast %32 : f32 to vector<8x1xf32>
    %34 = arith.mulf %0, %33 : vector<8x1xf32>
    %c1_16 = arith.constant 1 : index
    %c2_17 = arith.constant 2 : index
    %35 = memref.load %arg3[%c1_16, %c2_17] : memref<2x4xf32, #tpu.memory_space<smem>>
    %36 = vector.broadcast %35 : f32 to vector<8x1xf32>
    %37 = arith.mulf %1, %36 : vector<8x1xf32>
    %38 = arith.addf %34, %37 : vector<8x1xf32>
    %c0_18 = arith.constant 0 : index
    %c2_19 = arith.constant 2 : index
    %39 = memref.load %arg4[%c0_18, %c2_19] : memref<1x4xf32, #tpu.memory_space<smem>>
    %40 = vector.broadcast %39 : f32 to vector<8x1xf32>
    %41 = arith.addf %38, %40 : vector<8x1xf32>
    %42 = arith.negf %41 : vector<8x1xf32>
    %43 = math.exp %42 : vector<8x1xf32>
    %cst_20 = arith.constant 1.000000e+00 : f32
    %44 = vector.broadcast %cst_20 : f32 to vector<8x1xf32>
    %45 = arith.addf %44, %43 : vector<8x1xf32>
    %46 = arith.divf %44, %45 : vector<8x1xf32>
    %c0_21 = arith.constant 0 : index
    %c3 = arith.constant 3 : index
    %47 = memref.load %arg3[%c0_21, %c3] : memref<2x4xf32, #tpu.memory_space<smem>>
    %48 = vector.broadcast %47 : f32 to vector<8x1xf32>
    %49 = arith.mulf %0, %48 : vector<8x1xf32>
    %c1_22 = arith.constant 1 : index
    %c3_23 = arith.constant 3 : index
    %50 = memref.load %arg3[%c1_22, %c3_23] : memref<2x4xf32, #tpu.memory_space<smem>>
    %51 = vector.broadcast %50 : f32 to vector<8x1xf32>
    %52 = arith.mulf %1, %51 : vector<8x1xf32>
    %53 = arith.addf %49, %52 : vector<8x1xf32>
    %c0_24 = arith.constant 0 : index
    %c3_25 = arith.constant 3 : index
    %54 = memref.load %arg4[%c0_24, %c3_25] : memref<1x4xf32, #tpu.memory_space<smem>>
    %55 = vector.broadcast %54 : f32 to vector<8x1xf32>
    %56 = arith.addf %53, %55 : vector<8x1xf32>
    %57 = arith.negf %56 : vector<8x1xf32>
    %58 = math.exp %57 : vector<8x1xf32>
    %cst_26 = arith.constant 1.000000e+00 : f32
    %59 = vector.broadcast %cst_26 : f32 to vector<8x1xf32>
    %60 = arith.addf %59, %58 : vector<8x1xf32>
    %61 = arith.divf %59, %60 : vector<8x1xf32>
    %c0_27 = arith.constant 0 : index
    %c0_28 = arith.constant 0 : index
    %62 = vector.load %arg6[%c0_27, %c0_28] : memref<1x8xf32, #tpu.memory_space<vmem>>, vector<1x8xf32>
    %c0_29 = arith.constant 0 : index
    %c0_30 = arith.constant 0 : index
    %63 = vector.load %arg5[%c0_29, %c0_30] : memref<4x8xf32, #tpu.memory_space<vmem>>, vector<1x8xf32>
    %64 = vector.broadcast %16 : vector<8x1xf32> to vector<8x8xf32>
    %65 = vector.broadcast %63 : vector<1x8xf32> to vector<8x8xf32>
    %66 = arith.mulf %64, %65 : vector<8x8xf32>
    %67 = vector.broadcast %62 : vector<1x8xf32> to vector<8x8xf32>
    %68 = arith.addf %67, %66 : vector<8x8xf32>
    %c1_31 = arith.constant 1 : index
    %c0_32 = arith.constant 0 : index
    %69 = vector.load %arg5[%c1_31, %c0_32] : memref<4x8xf32, #tpu.memory_space<vmem>>, vector<1x8xf32>
    %70 = vector.broadcast %31 : vector<8x1xf32> to vector<8x8xf32>
    %71 = vector.broadcast %69 : vector<1x8xf32> to vector<8x8xf32>
    %72 = arith.mulf %70, %71 : vector<8x8xf32>
    %73 = arith.addf %68, %72 : vector<8x8xf32>
    %c2_33 = arith.constant 2 : index
    %c0_34 = arith.constant 0 : index
    %74 = vector.load %arg5[%c2_33, %c0_34] : memref<4x8xf32, #tpu.memory_space<vmem>>, vector<1x8xf32>
    %75 = vector.broadcast %46 : vector<8x1xf32> to vector<8x8xf32>
    %76 = vector.broadcast %74 : vector<1x8xf32> to vector<8x8xf32>
    %77 = arith.mulf %75, %76 : vector<8x8xf32>
    %78 = arith.addf %73, %77 : vector<8x8xf32>
    %c3_35 = arith.constant 3 : index
    %c0_36 = arith.constant 0 : index
    %79 = vector.load %arg5[%c3_35, %c0_36] : memref<4x8xf32, #tpu.memory_space<vmem>>, vector<1x8xf32>
    %80 = vector.broadcast %61 : vector<8x1xf32> to vector<8x8xf32>
    %81 = vector.broadcast %79 : vector<1x8xf32> to vector<8x8xf32>
    %82 = arith.mulf %80, %81 : vector<8x8xf32>
    %83 = arith.addf %78, %82 : vector<8x8xf32>
    %84 = arith.negf %83 : vector<8x8xf32>
    %85 = math.exp %84 : vector<8x8xf32>
    %cst_37 = arith.constant 1.000000e+00 : f32
    %86 = vector.broadcast %cst_37 : f32 to vector<8x8xf32>
    %87 = arith.addf %86, %85 : vector<8x8xf32>
    %88 = arith.divf %86, %87 : vector<8x8xf32>
    %c0_38 = arith.constant 0 : index
    %c0_39 = arith.constant 0 : index
    %89 = vector.load %arg7[%c0_38, %c0_39] : memref<8x128xf32, #tpu.memory_space<vmem>>, vector<8x128xf32>
    %cst_40 = arith.constant dense<0.000000e+00> : vector<8x128xf32>
    %90 = tpu.matmul %88, %89, %cst_40 {dimension_numbers = #tpu.dot_dimension_numbers<[1], [0], [0], [1], [0, 0, 1, 1], [], []>} : vector<8x8xf32>, vector<8x128xf32>, vector<8x128xf32> -> vector<8x128xf32>
    %c0_41 = arith.constant 0 : index
    %c0_42 = arith.constant 0 : index
    %91 = vector.load %arg8[%c0_41, %c0_42] : memref<1x128xf32, #tpu.memory_space<vmem>>, vector<1x128xf32>
    %92 = vector.broadcast %91 : vector<1x128xf32> to vector<8x128xf32>
    %93 = arith.addf %90, %92 : vector<8x128xf32>
    %94 = arith.negf %93 : vector<8x128xf32>
    %95 = math.exp %94 : vector<8x128xf32>
    %cst_43 = arith.constant 1.000000e+00 : f32
    %96 = vector.broadcast %cst_43 : f32 to vector<8x128xf32>
    %97 = arith.addf %96, %95 : vector<8x128xf32>
    %98 = arith.divf %96, %97 : vector<8x128xf32>
    %c0_44 = arith.constant 0 : index
    %c0_45 = arith.constant 0 : index
    %99 = vector.load %arg9[%c0_44, %c0_45] : memref<8x128xf32, #tpu.memory_space<vmem>>, vector<8x128xf32>
    tpu.vector_store %arg9[%c0_44, %c0_45], %98 {strides = array<i32>} : memref<8x128xf32, #tpu.memory_space<vmem>>, vector<8x128xf32>,
    return
  }
  func.func @transform_0(%arg0: i32) -> (i32, i32) {
    %c0_i32 = arith.constant 0 : i32
    %c0_i32_0 = arith.constant 0 : i32
    return %arg0, %c0_i32 : i32, i32
  }
  func.func @transform_1(%arg0: i32) -> (i32, i32) {
    %c0_i32 = arith.constant 0 : i32
    %c0_i32_0 = arith.constant 0 : i32
    return %arg0, %c0_i32 : i32, i32
  }
  func.func @transform_2(%arg0: i32) -> (i32, i32) {
    %c0_i32 = arith.constant 0 : i32
    %c0_i32_0 = arith.constant 0 : i32
    %c0_i32_1 = arith.constant 0 : i32
    return %c0_i32, %c0_i32_0 : i32, i32
  }
  func.func @transform_3(%arg0: i32) -> (i32, i32) {
    %c0_i32 = arith.constant 0 : i32
    %c0_i32_0 = arith.constant 0 : i32
    %c0_i32_1 = arith.constant 0 : i32
    return %c0_i32, %c0_i32_0 : i32, i32
  }
  func.func @transform_4(%arg0: i32) -> (i32, i32) {
    %c0_i32 = arith.constant 0 : i32
    %c0_i32_0 = arith.constant 0 : i32
    %c0_i32_1 = arith.constant 0 : i32
    return %c0_i32, %c0_i32_0 : i32, i32
  }
  func.func @transform_5(%arg0: i32) -> (i32, i32) {
    %c0_i32 = arith.constant 0 : i32
    %c0_i32_0 = arith.constant 0 : i32
    %c0_i32_1 = arith.constant 0 : i32
    return %c0_i32, %c0_i32_0 : i32, i32
  }
  func.func @transform_6(%arg0: i32) -> (i32, i32) {
    %c0_i32 = arith.constant 0 : i32
    %c0_i32_0 = arith.constant 0 : i32
    %c0_i32_1 = arith.constant 0 : i32
    return %c0_i32, %c0_i32_0 : i32, i32
  }
  func.func @transform_7(%arg0: i32) -> (i32, i32) {
    %c0_i32 = arith.constant 0 : i32
    %c0_i32_0 = arith.constant 0 : i32
    %c0_i32_1 = arith.constant 0 : i32
    return %c0_i32, %c0_i32_0 : i32, i32
  }
  func.func @transform_8(%arg0: i32) -> (i32, i32) {
    %c0_i32 = arith.constant 0 : i32
    %c0_i32_0 = arith.constant 0 : i32
    return %arg0, %c0_i32 : i32, i32
  }
}

</mosaic_0001>

<llo_original>
// kernel: tpu_custom_call.1
$region0: #{tpu_custom_call.1}
  #allocation0 [shape = 'u32[]', space=smem, size = 0x4, offset = 0x4, fixed_abs, tag = 'smem constant byte address 0x4 - core index']
  #allocation1 [shape = 'u32[144,128]{1,0:T(1,128)}', space=vmem, size = 0x12000, scoped, tag = 'internal scratch']
  %s0 = inlined_call_operand.vmem [shape: f32[8,1], index: 0, kind: input, shape index: {}]
  %s1 = inlined_call_operand.vmem [shape: f32[8,1], index: 1, kind: input, shape index: {}]
  %s2 = inlined_call_operand.vmem [shape: f32[2,4], index: 2, kind: input, shape index: {}]
  %s3 = inlined_call_operand.vmem [shape: f32[1,4], index: 3, kind: input, shape index: {}]
  %s4 = inlined_call_operand.vmem [shape: f32[4,8], index: 4, kind: input, shape index: {}]
  %s5 = inlined_call_operand.vmem [shape: f32[1,8], index: 5, kind: input, shape index: {}]
  %s6 = inlined_call_operand.vmem [shape: f32[8,128], index: 6, kind: input, shape index: {}]
  %s7 = inlined_call_operand.vmem [shape: f32[1,128], index: 7, kind: input, shape index: {}]
  %s8 = inlined_call_operand.hbm [shape: f32[8,128], index: 8, kind: output, shape index: {}]
  %s9 = sld [smem:[#allocation0]]
  $region50: #{tpu_custom_call.1} parent=0
    _
  %s11 = ssub.s32 1, %s9
  %s12 = scalar_select 0, %s11, %s9
  $region1: #{tpu_custom_call.1} parent=0
    #allocation2 [shape = 'u8[1024]{0}', space=smem, size = 0x400, scoped, tag = 'input window, operand 2, single buffered']
    #allocation3 [shape = 's32[1]{0}', space=sflag, size = 0x4, scoped, tag = 'scoped memory for tpu_custom_call.1']
    #allocation4 [shape = 's32[1]{0}', space=sflag, size = 0x4, scoped, tag = 'scoped memory for tpu_custom_call.1']
    #allocation5 [shape = 'u8[512]{0}', space=smem, size = 0x200, scoped, tag = 'input window, operand 3, single buffered']
    #allocation6 [shape = 's32[1]{0}', space=sflag, size = 0x4, scoped, tag = 'scoped memory for tpu_custom_call.1']
    #allocation7 [shape = 'u8[4096]{0}', space=vmem, size = 0x1000, scoped, tag = 'output window, operand 0, single buffered']
    %13 = vsyncpa [#allocation4], 0
    %14 = vsyncpa [#allocation6], 0
    %15 = vsyncpa [#allocation3], 0
    // Predicated region
    $region2: #{tpu_custom_call.1} parent=1 // pred_check
      _
    $region3: #{tpu_custom_call.1} parent=1 // pred_check_branch
      %17 = sbr.rel (0) target = $region5
    $region4: #{tpu_custom_call.1} parent=1 // pred_region
      _
    $region5: #{tpu_custom_call.1} parent=1 // pred_fallthru
      _
    // Predicated region
    $region6: #{tpu_custom_call.1} parent=1 // pred_check
      _
    $region7: #{tpu_custom_call.1} parent=1 // pred_check_branch
      %19 = sbr.rel (0) target = $region9
    $region8: #{tpu_custom_call.1} parent=1 // pred_region
      _
    $region9: #{tpu_custom_call.1} parent=1 // pred_fallthru
      _
    // Predicated region
    $region10: #{tpu_custom_call.1} parent=1 // pred_check
      _
    $region11: #{tpu_custom_call.1} parent=1 // pred_check_branch
      %21 = sbr.rel (0) target = $region13
    $region12: #{tpu_custom_call.1} parent=1 // pred_region
      %s23 = ssub.s32 32, 32
      %24 = vsyncadd [#allocation4], %s23
      %s26 = sshll.u32 %s2, 4
      %s27 = int_to_ptr.vmem [resolvable:$true] %s26
      %29 = dma.vmem_to_smem %s27, 32, [#allocation2], [#allocation4]
    $region13: #{tpu_custom_call.1} parent=1 // pred_fallthru
      _
    // Predicated region
    $region14: #{tpu_custom_call.1} parent=1 // pred_check
      _
    $region15: #{tpu_custom_call.1} parent=1 // pred_check_branch
      %31 = sbr.rel (0) target = $region17
    $region16: #{tpu_custom_call.1} parent=1 // pred_region
      %s33 = ssub.s32 16, 16
      %34 = vsyncadd [#allocation6], %s33
      %s36 = sshll.u32 %s3, 4
      %s37 = int_to_ptr.vmem [resolvable:$true] %s36
      %39 = dma.vmem_to_smem %s37, 16, [#allocation5], [#allocation6]
    $region17: #{tpu_custom_call.1} parent=1 // pred_fallthru
      _
    // Predicated region
    $region18: #{tpu_custom_call.1} parent=1 // pred_check
      _
    $region19: #{tpu_custom_call.1} parent=1 // pred_check_branch
      %41 = sbr.rel (0) target = $region21
    $region20: #{tpu_custom_call.1} parent=1 // pred_region
      _
    $region21: #{tpu_custom_call.1} parent=1 // pred_fallthru
      _
    // Predicated region
    $region22: #{tpu_custom_call.1} parent=1 // pred_check
      _
    $region23: #{tpu_custom_call.1} parent=1 // pred_check_branch
      %43 = sbr.rel (0) target = $region25
    $region24: #{tpu_custom_call.1} parent=1 // pred_region
      _
    $region25: #{tpu_custom_call.1} parent=1 // pred_fallthru
      _
    // Predicated region
    $region26: #{tpu_custom_call.1} parent=1 // pred_check
      _
    $region27: #{tpu_custom_call.1} parent=1 // pred_check_branch
      %45 = sbr.rel (0) target = $region29
    $region28: #{tpu_custom_call.1} parent=1 // pred_region
      _
    $region29: #{tpu_custom_call.1} parent=1 // pred_fallthru
      _
    // Predicated region
    $region30: #{tpu_custom_call.1} parent=1 // pred_check
      _
    $region31: #{tpu_custom_call.1} parent=1 // pred_check_branch
      %47 = sbr.rel (0) target = $region33
    $region32: #{tpu_custom_call.1} parent=1 // pred_region
      _
    $region33: #{tpu_custom_call.1} parent=1 // pred_fallthru
      _
    // Predicated region
    $region34: #{tpu_custom_call.1} parent=1 // pred_check
      _
    $region35: #{tpu_custom_call.1} parent=1 // pred_check_branch
      %49 = sbr.rel (0) target = $region37
    $region36: #{tpu_custom_call.1} parent=1 // pred_region
      %50 = dma.done [#allocation4], 32
    $region37: #{tpu_custom_call.1} parent=1 // pred_fallthru
      _
    // Predicated region
    $region38: #{tpu_custom_call.1} parent=1 // pred_check
      _
    $region39: #{tpu_custom_call.1} parent=1 // pred_check_branch
      %52 = sbr.rel (0) target = $region41
    $region40: #{tpu_custom_call.1} parent=1 // pred_region
      %53 = dma.done [#allocation6], 16
    $region41: #{tpu_custom_call.1} parent=1 // pred_fallthru
      _
    %54 = sfence
    %v55 = vld [vmem:[%s0] sm:$0xff]
    %v56 = vld [vmem:[%s1] sm:$0xff]
    %s57 = sld [smem:[#allocation2]]
    %v58 = vstv %s57
    %v59 = vmul.f32 %v55, %v58
    %s60 = sld [smem:[#allocation2 + $0x80]]
    %v61 = vstv %s60
    %v62 = vmul.f32 %v56, %v61
    %v63 = vadd.f32 %v59, %v62
    %s64 = sld [smem:[#allocation5]]
    %v65 = vstv %s64
    %v66 = vadd.f32 %v63, %v65
    %v67 = vxor.u32 %v66, 2147483648
    %v68 = vmul.f32 %v67, 1.442695
    %v69 = vpow.pop %v68
    %v70 = vadd.f32 %v69, 1.0
    %v71 = vrcp.pop %v70
    %v72 = vmul.f32 1.0, %v71
    %s73 = sld [smem:[#allocation2 + $0x1]]
    %v74 = vstv %s73
    %v75 = vmul.f32 %v55, %v74
    %s76 = sld [smem:[#allocation2 + $0x81]]
    %v77 = vstv %s76
    %v78 = vmul.f32 %v56, %v77
    %v79 = vadd.f32 %v75, %v78
    %s80 = sld [smem:[#allocation5 + $0x1]]
    %v81 = vstv %s80
    %v82 = vadd.f32 %v79, %v81
    %v83 = vxor.u32 %v82, 2147483648
    %v84 = vmul.f32 %v83, 1.442695
    %v85 = vpow.pop %v84
    %v86 = vadd.f32 %v85, 1.0
    %v87 = vrcp.pop %v86
    %v88 = vmul.f32 1.0, %v87
    %s89 = sld [smem:[#allocation2 + $0x2]]
    %v90 = vstv %s89
    %v91 = vmul.f32 %v55, %v90
    %s92 = sld [smem:[#allocation2 + $0x82]]
    %v93 = vstv %s92
    %v94 = vmul.f32 %v56, %v93
    %v95 = vadd.f32 %v91, %v94
    %s96 = sld [smem:[#allocation5 + $0x2]]
    %v97 = vstv %s96
    %v98 = vadd.f32 %v95, %v97
    %v99 = vxor.u32 %v98, 2147483648
    %v100 = vmul.f32 %v99, 1.442695
    %v101 = vpow.pop %v100
    %v102 = vadd.f32 %v101, 1.0
    %v103 = vrcp.pop %v102
    %v104 = vmul.f32 1.0, %v103
    %s105 = sld [smem:[#allocation2 + $0x3]]
    %v106 = vstv %s105
    %v107 = vmul.f32 %v55, %v106
    %s108 = sld [smem:[#allocation2 + $0x83]]
    %v109 = vstv %s108
    %v110 = vmul.f32 %v56, %v109
    %v111 = vadd.f32 %v107, %v110
    %s112 = sld [smem:[#allocation5 + $0x3]]
    %v113 = vstv %s112
    %v114 = vadd.f32 %v111, %v113
    %v115 = vxor.u32 %v114, 2147483648
    %v116 = vmul.f32 %v115, 1.442695
    %v117 = vpow.pop %v116
    %v118 = vadd.f32 %v117, 1.0
    %v119 = vrcp.pop %v118
    %v120 = vmul.f32 1.0, %v119
    %v121 = vld [vmem:[%s5] sm:$0x1]
    %v122 = vld [vmem:[%s4] sm:$0x1]
    %124 = vset.pattern.permute.xlu0 0
    %125 = vperm.xlu0 %124, %v72
    %v126 = vpop.permute.xlu0 %125
    %v128 = vlaneseq
    %v129 = vshrl.u32 %v128, 7
    %v130 = vsub.s32 0, %v129
    %v131 = vrot.slane %v122, %v130
    %v132 = vmul.f32 %v126, %v131
    %v134 = vlaneseq
    %v135 = vshrl.u32 %v134, 7
    %v136 = vsub.s32 0, %v135
    %v137 = vrot.slane %v121, %v136
    %v139 = vadd.f32 %v137, %v132
    %v140 = vld [vmem:[%s4 + $0x1] sm:$0x1]
    %142 = vset.pattern.permute.xlu0 0
    %143 = vperm.xlu0 %142, %v88
    %v144 = vpop.permute.xlu0 %143
    %v146 = vlaneseq
    %v147 = vshrl.u32 %v146, 7
    %v148 = vsub.s32 0, %v147
    %v149 = vrot.slane %v140, %v148
    %v150 = vmul.f32 %v144, %v149
    %v151 = vadd.f32 %v139, %v150
    %v152 = vld [vmem:[%s4 + $0x2] sm:$0x1]
    %154 = vset.pattern.permute.xlu0 0
    %155 = vperm.xlu0 %154, %v104
    %v156 = vpop.permute.xlu0 %155
    %v158 = vlaneseq
    %v159 = vshrl.u32 %v158, 7
    %v160 = vsub.s32 0, %v159
    %v161 = vrot.slane %v152, %v160
    %v162 = vmul.f32 %v156, %v161
    %v163 = vadd.f32 %v151, %v162
    %v164 = vld [vmem:[%s4 + $0x3] sm:$0x1]
    %166 = vset.pattern.permute.xlu0 0
    %167 = vperm.xlu0 %166, %v120
    %v168 = vpop.permute.xlu0 %167
    %v170 = vlaneseq
    %v171 = vshrl.u32 %v170, 7
    %v172 = vsub.s32 0, %v171
    %v173 = vrot.slane %v164, %v172
    %v174 = vmul.f32 %v168, %v173
    %v175 = vadd.f32 %v163, %v174
    %v176 = vxor.u32 %v175, 2147483648
    %v177 = vmul.f32 %v176, 1.442695
    %v178 = vpow.pop %v177
    %v179 = vadd.f32 %v178, 1.0
    %v180 = vrcp.pop %v179
    %v181 = vmul.f32 1.0, %v180
    %v182 = vld [vmem:[%s6] sm:$0xff]
    %v183 = vld [vmem:[%s7] sm:$0x1]
    %v185 = vlaneseq
    %v186 = vshrl.u32 %v185, 7
    %v187 = vsub.s32 0, %v186
    %v188 = vrot.slane %v183, %v187
    %vm190 = vcmask 64512
    %v192 = vsel %vm190, %v181, 0
    %194 = vmatprep.subr.mxu0 0.0
    %195 = vmatpush1.msra.mxu0 0.0
    %196 = vmatprep.subr.mxu0 0.0
    %197 = vmatpush1.msra.mxu0 0.0
    %198 = vmatprep.subr.mxu0 0.0
    %199 = vmatpush1.msra.mxu0 0.0
    %200 = vmatprep.subr.mxu0 0.0
    %201 = vmatpush1.msra.mxu0 0.0
    %202 = vmatprep.subr.mxu0 0.0
    %203 = vmatpush1.msra.mxu0 0.0
    %204 = vmatprep.subr.mxu0 0.0
    %205 = vmatpush1.msra.mxu0 0.0
    %206 = vmatprep.subr.mxu0 0.0
    %207 = vmatpush1.msra.mxu0 0.0
    %208 = vmatprep.subr.mxu0 0.0
    %209 = vmatpush1.msra.mxu0 0.0
    %210 = vmatprep.subr.mxu0 0.0
    %211 = vmatpush1.msra.mxu0 0.0
    %212 = vmatprep.subr.mxu0 0.0
    %213 = vmatpush1.msra.mxu0 0.0
    %214 = vmatprep.subr.mxu0 0.0
    %215 = vmatpush1.msra.mxu0 0.0
    %216 = vmatprep.subr.mxu0 0.0
    %217 = vmatpush1.msra.mxu0 0.0
    %218 = vmatprep.subr.mxu0 0.0
    %219 = vmatpush1.msra.mxu0 0.0
    %220 = vmatprep.subr.mxu0 0.0
    %221 = vmatpush1.msra.mxu0 0.0
    %222 = vmatprep.subr.mxu0 0.0
    %223 = vmatpush1.msra.mxu0 0.0
    %224 = vmatprep.subr.mxu0 0.0
    %225 = vmatpush1.msra.mxu0 %v182
    %226 = vmatprep.subr.mxu0 0.0
    %227 = vmatpush2.msra.mxu0 0.0
    %228 = vmatprep.subr.mxu0 0.0
    %229 = vmatpush2.msra.mxu0 0.0
    %230 = vmatprep.subr.mxu0 0.0
    %231 = vmatpush2.msra.mxu0 0.0
    %232 = vmatprep.subr.mxu0 0.0
    %233 = vmatpush2.msra.mxu0 0.0
    %234 = vmatprep.subr.mxu0 0.0
    %235 = vmatpush2.msra.mxu0 0.0
    %236 = vmatprep.subr.mxu0 0.0
    %237 = vmatpush2.msra.mxu0 0.0
    %238 = vmatprep.subr.mxu0 0.0
    %239 = vmatpush2.msra.mxu0 0.0
    %240 = vmatprep.subr.mxu0 0.0
    %241 = vmatpush2.msra.mxu0 0.0
    %242 = vmatprep.subr.mxu0 0.0
    %243 = vmatpush2.msra.mxu0 0.0
    %244 = vmatprep.subr.mxu0 0.0
    %245 = vmatpush2.msra.mxu0 0.0
    %246 = vmatprep.subr.mxu0 0.0
    %247 = vmatpush2.msra.mxu0 0.0
    %248 = vmatprep.subr.mxu0 0.0
    %249 = vmatpush2.msra.mxu0 0.0
    %250 = vmatprep.subr.mxu0 0.0
    %251 = vmatpush2.msra.mxu0 0.0
    %252 = vmatprep.subr.mxu0 0.0
    %253 = vmatpush2.msra.mxu0 0.0
    %254 = vmatprep.subr.mxu0 0.0
    %255 = vmatpush2.msra.mxu0 0.0
    %256 = vmatprep.subr.mxu0 0.0
    %257 = vmatpush2.msra.mxu0 0.0
    %258 = vmatprep.mubr.f32.mxu0 0.0
    %259 = vmatmul.mubr.f32.gmra.mxu0 %v192
    %v260 = vpop.f32.mrf.mxu0
    %v261 = vadd.f32 %v188, %v260
    %v262 = vpop.f32.mrf.mxu0
    %263 = vdwg.mxu0
    %v264 = vxor.u32 %v261, 2147483648
    %v265 = vmul.f32 %v264, 1.442695
    %v266 = vpow.pop %v265
    %v267 = vadd.f32 %v266, 1.0
    %v268 = vrcp.pop %v267
    %v269 = vmul.f32 1.0, %v268
    %270 = vst [vmem:[#allocation7] sm:$0xff] %v269
    // Predicated region
    $region42: #{tpu_custom_call.1} parent=1 // pred_check
      _
    $region43: #{tpu_custom_call.1} parent=1 // pred_check_branch
      %272 = sbr.rel (0) target = $region45
    $region44: #{tpu_custom_call.1} parent=1 // pred_region
      %s274 = ssub.s32 128, 128
      %275 = vsyncadd [#allocation3], %s274
      %s277 = sshll.u32 [#allocation7], 4
      %s278 = int_to_ptr.vmem [resolvable:$true] %s277
      %280 = dma.vmem_to_hbm [thread:$0]  %s278, 128, %s8, [#allocation3]
    $region45: #{tpu_custom_call.1} parent=1 // pred_fallthru
      _
    // Predicated region
    $region46: #{tpu_custom_call.1} parent=1 // pred_check
      _
    $region47: #{tpu_custom_call.1} parent=1 // pred_check_branch
      %282 = sbr.rel (0) target = $region49
    $region48: #{tpu_custom_call.1} parent=1 // pred_region
      %283 = dma.done [#allocation3], 128
    $region49: #{tpu_custom_call.1} parent=1 // pred_fallthru
      _
    %284 = vsyncpa [#allocation3], 1
    %285 = vsyncpa [#allocation4], 1
    %286 = vsyncpa [#allocation6], 1

</llo_original>
